<compile_context>
chip_gen: v5e
topology: v5e:2x2
jax: 0.10.0
libtpu: 0.0.40
codegen_flags: <defaults>
</compile_context>

<pallas_src>
import jax
import jax.numpy as jnp
import numpy as np
from jax.experimental import pallas as pl
from jax.experimental.pallas import tpu as pltpu

VOCAB_OFFSET = 30522      # BERT wordpiece vocab size; entity ids start here
HIDDEN = 128              # embedding dim (real BERT would be 768; small demo)
NUM_ENTITIES = 64         # rows in the entity embedding table


def _gather_kernel(idx_ref, emb_row_ref, out_ref):
    # idx_ref     : SMEM (batch, num_ent) int32 -- prefetched row indices; only
    #                                              consumed by the index_maps.
    # emb_row_ref : VMEM (1, 1, hidden)         -- the embedding row gathered for
    #                                              this (b, e) grid step.
    # out_ref     : VMEM (1, num_ent, hidden)   -- resident across the inner axis,
    #                                              written back once per batch row.
    del idx_ref  # used only by the index_maps
    e = pl.program_id(1)
    out_ref[:, pl.ds(e, 1), :] = emb_row_ref[...].astype(out_ref.dtype)


def bert_entity_embedding(entity_ids, entity_emb):
    """entity_ids: (batch, num_ent) int; entity_emb: (num_entities, hidden) float."""
    batch, num_ent = entity_ids.shape
    num_entities, hidden = entity_emb.shape

    # Offset subtraction + clamp done once in the wrapper.  Clamping protects the
    # unchecked data-dependent DMA; valid ids are unaffected.
    idx = jnp.clip(entity_ids.astype(jnp.int32) - VOCAB_OFFSET, 0, num_entities - 1)

    # Free unit-dim reshape (row-major bitcast) so the table block's last two
    # dims equal the full array dims -> clean (8,128)-rule-compliant blocks.
    emb3 = entity_emb.reshape(num_entities, 1, hidden)

    out = pl.pallas_call(
        _gather_kernel,
        out_shape=jax.ShapeDtypeStruct((batch, num_ent, hidden), entity_emb.dtype),
        grid_spec=pltpu.PrefetchScalarGridSpec(
            num_scalar_prefetch=1,
            grid=(batch, num_ent),
            in_specs=[
                # One embedding row per grid step, selected via the prefetched
                # SMEM indices (data-dependent index_map -> DMA gather).
                pl.BlockSpec((1, 1, hidden), lambda b, e, idx: (idx[b, e], 0, 0)),
            ],
            # Output block is resident across the inner (entity) axis; one
            # lane-dense writeback per batch row, no padding, no post-slice.
            out_specs=pl.BlockSpec((1, num_ent, hidden), lambda b, e, idx: (b, 0, 0)),
        ),
        compiler_params=pltpu.CompilerParams(
            # Batch rows are independent -> shard across v7x's two TensorCores;
            # the inner axis carries the resident output block -> arbitrary.
            dimension_semantics=("parallel", "arbitrary"),
        ),
    )(idx, emb3)

    return out


if __name__ == "__main__":
    key = jax.random.PRNGKey(0)
    k_emb, k_ids = jax.random.split(key)

    # Deterministic synthetic "checkpoint": the entity embedding table.
    entity_emb = jax.random.normal(k_emb, (NUM_ENTITIES, HIDDEN), dtype=jnp.float32)

    # Small input consistent with the forward: (batch=2, num_ent=8) entity ids
    # in [30522, 30522 + NUM_ENTITIES).
    batch, num_ent = 2, 8
    entity_ids = jax.random.randint(
        k_ids, (batch, num_ent), VOCAB_OFFSET, VOCAB_OFFSET + NUM_ENTITIES,
        dtype=jnp.int32,
    )

    out = jax.block_until_ready(bert_entity_embedding(entity_ids, entity_emb))

    # Pure-JAX reference (same semantics as the torch gather).
    ref = jnp.take(entity_emb, entity_ids.reshape(-1) - VOCAB_OFFSET, axis=0)
    ref = ref.reshape(batch, num_ent, HIDDEN)

    # The DMA gather is an exact copy -> bit-exact against the reference.
    np.testing.assert_array_equal(np.asarray(out), np.asarray(ref))
    assert out.shape == (batch, num_ent, HIDDEN)
    print("KERNEL_OK")
</pallas_src>

<mosaic_0001>
module attributes {stable_mosaic.version = 11 : i64} {
  func.func @_gather_kernel(%arg0: i32, %arg1: i32, %arg2: memref<2x8xi32, #tpu.memory_space<smem>>, %arg3: memref<1x1x128xf32, #tpu.memory_space<vmem>>, %arg4: memref<1x8x128xf32, #tpu.memory_space<vmem>>) attributes {dimension_semantics = [#tpu.dimension_semantics<parallel>, #tpu.dimension_semantics<arbitrary>], iteration_bounds = array<i64: 2, 8>, scalar_prefetch = 1 : i64, scratch_operands = 0 : i64, tpu.core_type = #tpu.core_type<tc>, window_params = [{transform_indices = @transform_0, window_bounds = array<i64: 1, 1, 128>}, {transform_indices = @transform_1, window_bounds = array<i64: 1, 8, 128>}]} {
    %c0 = arith.constant 0 : index
    %c0_0 = arith.constant 0 : index
    %c0_1 = arith.constant 0 : index
    %0 = vector.load %arg3[%c0, %c0_0, %c0_1] : memref<1x1x128xf32, #tpu.memory_space<vmem>>, vector<1x1x128xf32>
    %c0_2 = arith.constant 0 : index
    %1 = arith.index_cast %arg1 : i32 to index
    %c0_3 = arith.constant 0 : index
    %2 = vector.load %arg4[%c0_2, %1, %c0_3] : memref<1x8x128xf32, #tpu.memory_space<vmem>>, vector<1x1x128xf32>
    tpu.vector_store %arg4[%c0_2, %1, %c0_3], %0 {strides = array<i32>} : memref<1x8x128xf32, #tpu.memory_space<vmem>>, vector<1x1x128xf32>,
    return
  }
  func.func @transform_0(%arg0: i32, %arg1: i32, %arg2: memref<2x8xi32, #tpu.memory_space<smem>>) -> (i32, i32, i32) {
    %0 = arith.index_cast %arg0 : i32 to index
    %1 = arith.index_cast %arg1 : i32 to index
    %2 = memref.load %arg2[%0, %1] : memref<2x8xi32, #tpu.memory_space<smem>>
    %c0_i32 = arith.constant 0 : i32
    %c0_i32_0 = arith.constant 0 : i32
    %c0_i32_1 = arith.constant 0 : i32
    return %2, %c0_i32, %c0_i32_0 : i32, i32, i32
  }
  func.func @transform_1(%arg0: i32, %arg1: i32, %arg2: memref<2x8xi32, #tpu.memory_space<smem>>) -> (i32, i32, i32) {
    %c0_i32 = arith.constant 0 : i32
    %c0_i32_0 = arith.constant 0 : i32
    %c0_i32_1 = arith.constant 0 : i32
    return %arg0, %c0_i32, %c0_i32_0 : i32, i32, i32
  }
}

</mosaic_0001>

<llo_original>
// kernel: tpu_custom_call.1
$region0: #{tpu_custom_call.1}
  #allocation0 [shape = 'u32[]', space=smem, size = 0x4, offset = 0x4, fixed_abs, tag = 'smem constant byte address 0x4 - core index']
  #allocation1 [shape = 'u32[72,128]{1,0:T(1,128)}', space=vmem, size = 0x9000, scoped, tag = 'internal scratch']
  #allocation2 [shape = 's32[1]{0}', space=sflag, size = 0x4, scoped, tag = 'scoped memory for tpu_custom_call.1']
  #allocation3 [shape = 'u8[1024]{0}', space=smem, size = 0x400, scoped, tag = 'prefetched SMEM operand 0']
  %s0 = inlined_call_operand.hbm [shape: s32[2,8], index: 0, kind: input, shape index: {}]
  %s1 = inlined_call_operand.hbm [shape: f32[64,1,128], index: 1, kind: input, shape index: {}]
  %s2 = inlined_call_operand.hbm [shape: f32[2,8,128], index: 2, kind: output, shape index: {}]
  %s3 = sld [smem:[#allocation0]]
  $region41: #{tpu_custom_call.1} parent=0
    _
  %s5 = ssub.s32 1, %s3
  %s6 = scalar_select 0, %s5, %s3
  %s8 = sshll.u32 %s0, 4
  %s9 = int_to_ptr.hbm [resolvable:$true] %s8
  %11 = dma.hbm_to_smem %s9, 32, [#allocation3], [#allocation2]
  %13 = dma.done [#allocation2], 32
  %14 = sfence
  $region1: #{tpu_custom_call.1} parent=0
    #allocation4 [shape = 'u8[1024]{0}', space=vmem, size = 0x400, scoped, tag = 'input window, operand 1']
    #allocation5 [shape = 's32[2]{0}', space=sflag, size = 0x8, scoped, tag = 'scoped memory for tpu_custom_call.1']
    #allocation6 [shape = 's32[2]{0}', space=sflag, size = 0x8, scoped, tag = 'scoped memory for tpu_custom_call.1']
    #allocation7 [shape = 'u8[8192]{0}', space=vmem, size = 0x2000, scoped, tag = 'output window, operand 0']
    %15 = vsyncpa [#allocation5], 0
    %s16 = scalar_lea.sflag [#allocation5], 1
    %17 = vsyncpa %s16, 0
    %18 = vsyncpa [#allocation6], 0
    %s19 = scalar_lea.sflag [#allocation6], 1
    %20 = vsyncpa %s19, 0
    loop: start=0, step=1, limit=18
    $region2: #{tpu_custom_call.1} parent=1 // loop_pre_header
      _
    $region3: #{tpu_custom_call.1} parent=1 // loop_header
      %s22 = sphi 0, %s26
      %p23 = scmp.ge.s32.totalorder %s22, 18
      %s29 = sphi 0, %s41
      %s30 = sphi 0, %s37
      %s31 = sphi 0, %s29
      %s32 = sphi 0, %s30
      %s33 = sphi 0, %s31
      %s34 = sphi 0, %s32
      %s60 = sphi 0, %s62
      %s63 = sphi 0, %s60
      %s64 = sphi 0, %s63
      %s80 = sphi 0, %s64
      %s86 = sphi 0, %s88
      %s89 = sphi 0, %s86
      %s90 = sphi 0, %s89
      %s106 = sphi 0, %s90
    $region4: #{tpu_custom_call.1} parent=1 // loop_header_branch
      %25 = sbr.rel (%p23) target = $region8
    $region5: #{tpu_custom_call.1} parent=1 // loop_body
      %s27 = ssub.s32 %s22, 1
      %s28 = ssub.s32 %s22, 2
      %s35 = sadd.s32 1, %s30
      %p36 = scmp.ge.s32.totalorder %s35, 8
      %s37 = scalar_select %p36, 0, %s35
      %s38 = sadd.s32 1, %s29
      %s39 = scalar_select %p36, %s38, %s29
      %p40 = scmp.ge.s32.totalorder %s39, 2
      %s41 = scalar_select %p40, 0, %s39
      %s42 = sshra.s32 %s30, 7
      %s43 = sand.u32 %s30, 127
      %s44 = sadd.s32 %s42, %s29
      %s45 = smul.u32 %s44, 128
      %s46 = sshra.s32 %s30, 7
      %s47 = sand.u32 %s30, 127
      %s48 = sadd.s32 %s45, %s47
      %s49 = sld [smem:[#allocation3 + %s48]]
      %s50 = sshra.s32 %s37, 7
      %s51 = sand.u32 %s37, 127
      %s52 = sadd.s32 %s50, %s41
      %s53 = smul.u32 %s52, 128
      %s54 = sshra.s32 %s37, 7
      %s55 = sand.u32 %s37, 127
      %s56 = sadd.s32 %s53, %s55
      %s57 = sld [smem:[#allocation3 + %s56]]
      %s58 = ssub.s32 %s49, %s57
      %p59 = scmp.eq.s32.totalorder %s58, 0
      %s61 = sadd.s32 %s60, 1
      %s62 = scalar_select %p59, %s60, %s61
      %p65 = pneg %p59
      %p66 = scmp.eq.s32.totalorder %s22, 15
      %p67 = por %p65, %p66
      %p68 = scmp.ne.s32.totalorder %s60, %s63
      %p69 = scmp.eq.s32.totalorder %s22, 0
      %p70 = por %p68, %p69
      %p71 = scmp.ne.s32.totalorder %s60, %s63
      %p72 = scmp.eq.s32.totalorder %s27, 15
      %p73 = por %p71, %p72
      %p74 = scmp.ne.s32.totalorder %s63, %s64
      %p75 = scmp.eq.s32.totalorder %s27, 0
      %p76 = por %p74, %p75
      %p77 = scmp.ne.s32.totalorder %s63, %s64
      %p78 = scmp.eq.s32.totalorder %s28, 15
      %p79 = por %p77, %p78
      %p81 = scmp.ne.s32.totalorder %s64, %s80
      %p82 = scmp.eq.s32.totalorder %s28, 0
      %p83 = por %p81, %p82
      %s84 = ssub.s32 %s29, %s41
      %p85 = scmp.eq.s32.totalorder %s84, 0
      %s87 = sadd.s32 %s86, 1
      %s88 = scalar_select %p85, %s86, %s87
      %p91 = pneg %p85
      %p92 = scmp.eq.s32.totalorder %s22, 15
      %p93 = por %p91, %p92
      %p94 = scmp.ne.s32.totalorder %s86, %s89
      %p95 = scmp.eq.s32.totalorder %s22, 0
      %p96 = por %p94, %p95
      %p97 = scmp.ne.s32.totalorder %s86, %s89
      %p98 = scmp.eq.s32.totalorder %s27, 15
      %p99 = por %p97, %p98
      %p100 = scmp.ne.s32.totalorder %s89, %s90
      %p101 = scmp.eq.s32.totalorder %s27, 0
      %p102 = por %p100, %p101
      %p103 = scmp.ne.s32.totalorder %s89, %s90
      %p104 = scmp.eq.s32.totalorder %s28, 15
      %p105 = por %p103, %p104
      %p107 = scmp.ne.s32.totalorder %s90, %s106
      %p108 = scmp.eq.s32.totalorder %s28, 0
      %p109 = por %p107, %p108
      %p110 = scmp.le.s32.totalorder 1, %s22
      %p111 = scmp.lt.s32.totalorder %s22, 17
      %p112 = pnand %p110, %p111
      %p113 = pneg %p112
      // Predicated region
      $region9: #{tpu_custom_call.1} parent=5 // pred_check
        _
      $region10: #{tpu_custom_call.1} parent=5 // pred_check_branch
        %115 = sbr.rel (%p112) target = $region12
      $region11: #{tpu_custom_call.1} parent=5 // pred_region
        %s116 = ssub.s32 %s22, 1
      $region12: #{tpu_custom_call.1} parent=5 // pred_fallthru
        _
      %p117 = scmp.lt.s32.totalorder %s22, 16
      // Predicated region
      $region13: #{tpu_custom_call.1} parent=5 // pred_check
        %p118 = pneg %p117
      $region14: #{tpu_custom_call.1} parent=5 // pred_check_branch
        %120 = sbr.rel (%p118) target = $region16
      $region15: #{tpu_custom_call.1} parent=5 // pred_region
        // Predicated region
        $region17: #{tpu_custom_call.1} parent=15 // pred_check
          %p121 = pneg %p70
        $region18: #{tpu_custom_call.1} parent=15 // pred_check_branch
          %123 = sbr.rel (%p121) target = $region20
        $region19: #{tpu_custom_call.1} parent=15 // pred_region
          %s124 = sand.u32 %s60, 1
          %s125 = scalar_lea.sflag [#allocation5], %s124
          %s126 = sand.u32 %s60, 1
          %s127 = scalar_lea.vmem [#allocation4], %s126
          %s128 = sshra.s32 %s30, 7
          %s129 = sand.u32 %s30, 127
          %s130 = sadd.s32 %s128, %s29
          %s131 = smul.u32 %s130, 128
          %s132 = sshra.s32 %s30, 7
          %s133 = sand.u32 %s30, 127
          %s134 = sadd.s32 %s131, %s133
          %s135 = sld [smem:[#allocation3 + %s134]]
          %137 = vsyncadd %s125, 0
          %s138 = scalar_lea.hbm %s1, %s135
          %s140 = sshll.u32 %s138, 4
          %s141 = int_to_ptr.hbm [resolvable:$true] %s140
          %s142 = sshll.u32 %s127, 4
          %s143 = int_to_ptr.vmem [resolvable:$true] %s142
          %145 = dma.hbm_to_vmem [thread:$0]  %s141, 16, %s143, %s125
        $region20: #{tpu_custom_call.1} parent=15 // pred_fallthru
          _
      $region16: #{tpu_custom_call.1} parent=5 // pred_fallthru
        _
      %p146 = scmp.le.s32.totalorder 1, %s22
      %p147 = scmp.lt.s32.totalorder %s22, 17
      %p148 = pnand %p146, %p147
      %p149 = pneg %p148
      // Predicated region
      $region21: #{tpu_custom_call.1} parent=5 // pred_check
        _
      $region22: #{tpu_custom_call.1} parent=5 // pred_check_branch
        %151 = sbr.rel (%p148) target = $region24
      $region23: #{tpu_custom_call.1} parent=5 // pred_region
        %s152 = ssub.s32 %s22, 1
        %s153 = sand.u32 %s63, 1
        %s154 = scalar_lea.sflag [#allocation5], %s153
        %s155 = sand.u32 %s63, 1
        %s156 = scalar_lea.vmem [#allocation4], %s155
        // Predicated region
        $region25: #{tpu_custom_call.1} parent=23 // pred_check
          %p157 = pneg %p76
        $region26: #{tpu_custom_call.1} parent=23 // pred_check_branch
          %159 = sbr.rel (%p157) target = $region28
        $region27: #{tpu_custom_call.1} parent=23 // pred_region
          %161 = dma.done %s154, 16
        $region28: #{tpu_custom_call.1} parent=23 // pred_fallthru
          _
        %s162 = sand.u32 %s63, 1
        %s163 = scalar_lea.sflag [#allocation5], %s162
        %s164 = sand.u32 %s63, 1
        %s165 = scalar_lea.vmem [#allocation4], %s164
        %p166 = pneg %p76
        %p167 = pneg %p73
        %p168 = pneg %p102
        %p169 = pneg %p99
        %s170 = sand.u32 %s89, 1
        %s171 = scalar_lea.sflag [#allocation6], %s170
        %s172 = sand.u32 %s89, 1
        %s173 = smul.addr %s172, 8
        %s174 = scalar_lea.vmem [#allocation7], %s173
        %s175 = sshra.s32 %s32, 7
        %s176 = sand.u32 %s32, 127
        %s177 = sadd.s32 %s175, %s31
        %s178 = smul.u32 %s177, 128
        %s179 = sshra.s32 %s32, 7
        %s180 = sand.u32 %s32, 127
        %s181 = sadd.s32 %s178, %s180
        %s182 = sld [smem:[#allocation3 + %s181]]
        %v183 = vld [vmem:[%s156] sm:$0x1]
        %s184 = scalar_lea.vmem %s174, %s32 [#allocation7]
        %185 = vst [vmem:[%s184] sm:$0x1] %v183
        %s186 = sand.u32 %s89, 1
        %s187 = scalar_lea.sflag [#allocation6], %s186
        %s188 = sand.u32 %s89, 1
        %s189 = smul.addr %s188, 8
        %s190 = scalar_lea.vmem [#allocation7], %s189
        // Predicated region
        $region29: #{tpu_custom_call.1} parent=23 // pred_check
          %p191 = pneg %p99
        $region30: #{tpu_custom_call.1} parent=23 // pred_check_branch
          %193 = sbr.rel (%p191) target = $region32
        $region31: #{tpu_custom_call.1} parent=23 // pred_region
          %195 = vsyncadd %s187, 0
          %s196 = smul.addr %s31, 8
          %s197 = scalar_lea.hbm %s2, %s196
          %s199 = sshll.u32 %s190, 4
          %s200 = int_to_ptr.vmem [resolvable:$true] %s199
          %s201 = sshll.u32 %s197, 4
          %s202 = int_to_ptr.hbm [resolvable:$true] %s201
          %204 = dma.vmem_to_hbm [thread:$0]  %s200, 128, %s202, %s187
        $region32: #{tpu_custom_call.1} parent=23 // pred_fallthru
          _
      $region24: #{tpu_custom_call.1} parent=5 // pred_fallthru
        _
      %p205 = scmp.le.s32.totalorder 2, %s22
      // Predicated region
      $region33: #{tpu_custom_call.1} parent=5 // pred_check
        %p206 = pneg %p205
      $region34: #{tpu_custom_call.1} parent=5 // pred_check_branch
        %208 = sbr.rel (%p206) target = $region36
      $region35: #{tpu_custom_call.1} parent=5 // pred_region
        %s209 = ssub.s32 %s22, 2
        // Predicated region
        $region37: #{tpu_custom_call.1} parent=35 // pred_check
          %p210 = pneg %p105
        $region38: #{tpu_custom_call.1} parent=35 // pred_check_branch
          %212 = sbr.rel (%p210) target = $region40
        $region39: #{tpu_custom_call.1} parent=35 // pred_region
          %s213 = sand.u32 %s90, 1
          %s214 = scalar_lea.sflag [#allocation6], %s213
          %s215 = sand.u32 %s90, 1
          %s216 = smul.addr %s215, 8
          %s217 = scalar_lea.vmem [#allocation7], %s216
          %219 = dma.done %s214, 128
        $region40: #{tpu_custom_call.1} parent=35 // pred_fallthru
          _
      $region36: #{tpu_custom_call.1} parent=5 // pred_fallthru
        _
    $region6: #{tpu_custom_call.1} parent=1 // loop_footer
      %s26 = sadd.s32 1, %s22
    $region7: #{tpu_custom_call.1} parent=1 // loop_footer_branch
      %21 = sbr.rel target = $region3
    $region8: #{tpu_custom_call.1} parent=1 // loop_exit
      _
    %220 = vsyncpa [#allocation5], 1
    %s221 = scalar_lea.sflag [#allocation5], 1
    %222 = vsyncpa %s221, 1
    %223 = vsyncpa [#allocation6], 1
    %s224 = scalar_lea.sflag [#allocation6], 1
    %225 = vsyncpa %s224, 1

</llo_original>
